<compile_context>
chip_gen: v7x
topology: tpu7x:2x2x1
jax: 0.10.0
libtpu: 0.0.40
codegen_flags: <defaults>
</compile_context>

<pallas_src>
import jax
import jax.numpy as jnp
from jax.experimental import pallas as pl
from jax.experimental.pallas import tpu as pltpu

LANE = 128  # TPU lane width (last dim of a vreg)


def _round_up(x, m):
    return (x + m - 1) // m * m


def _mlp_kernel(scal_ref, x_ref, w1_ref, b1_ref, w2_ref, o_ref):
    """Fused fc1 + ReLU + fc2 + sigmoid + rating rescale for one batch tile.

    scal_ref : SMEM (4,)    f32 -> [b2, rating_min, rating_scale, unused]
    x_ref    : VMEM (TB, D) bf16 activations (no lane padding on D)
    w1_ref   : VMEM (D, Hp) bf16 (resident)
    b1_ref   : VMEM (1, Hp) f32, zero-padded past H
    w2_ref   : VMEM (1, Hp) f32, zero-padded past H (fc2 weight stored as a row)
    o_ref    : VMEM (1, TB) f32 lane-dense prediction row
    """
    # fc1 on the MXU with f32 accumulation; bias + ReLU on the VPU.
    h = jnp.dot(x_ref[...], w1_ref[...], preferred_element_type=jnp.float32)
    h = jnp.maximum(h + b1_ref[...], 0.0)                       # (TB, Hp) f32

    # fc2 (out_features == 1) as a (1,Hp) x (TB,Hp)^T matvec so the result is
    # produced lane-dense as a (1, TB) row (no masked (TB,1) stores).  Padded
    # Hp lanes of both h and w2 are zero, so they contribute nothing.
    z_row = jax.lax.dot_general(
        w2_ref[...], h,
        dimension_numbers=(((1,), (1,)), ((), ())),
        preferred_element_type=jnp.float32)                     # (1, TB)

    b2 = scal_ref[0]
    r_min = scal_ref[1]
    r_scale = scal_ref[2]
    preds = jax.nn.sigmoid(z_row + b2) * r_scale + r_min        # f32 epilogue
    o_ref[...] = preds.astype(o_ref.dtype)


def hybrid_filtering_forward(X, params, rating_range, *,
                             block_b=2048, matmul_dtype=jnp.bfloat16):
    """Forward pass matching NNHybridFiltering.forward.

    X: int32 array of shape (B, 3) -> columns [user_id, item_id, sentiment_id]
    params: dict of embedding tables and fc weights/biases.
    rating_range: (min, max) as concrete Python floats.
    Returns: float32 array of shape (B, 1).
    """
    # ----- glue: embedding lookups + concat, done directly in the matmul dtype
    # so XLA fuses gather + concat + cast into one bf16 HBM write (no padding
    # of D, no extra f32 pass over the activations).
    u_tbl = params["user_emb"].astype(matmul_dtype)
    i_tbl = params["item_emb"].astype(matmul_dtype)
    us_tbl = params["u_sent_emb"].astype(matmul_dtype)
    is_tbl = params["i_sent_emb"].astype(matmul_dtype)
    embeddings = jnp.concatenate([
        jnp.take(u_tbl, X[:, 0], axis=0),
        jnp.take(i_tbl, X[:, 1], axis=0),
        jnp.take(us_tbl, X[:, 2], axis=0),
        jnp.take(is_tbl, X[:, 2], axis=0),   # same index column as the torch code
    ], axis=1)                                                  # (B, D) bf16

    B, D = embeddings.shape
    H = params["w1"].shape[1]
    Hp = _round_up(H, LANE)

    # Batch tile: multiple of 128 so the lane-dense (1, TB) output block is
    # legal and bf16 sublane packing (16 rows) is never masked.
    TB = _round_up(min(block_b, _round_up(B, LANE)), LANE)
    # v7x has two TensorCores: keep >= 2 grid steps when the tile is large.
    if _round_up(B, TB) // TB == 1 and TB >= 2 * LANE:
        TB = _round_up((TB + 1) // 2, LANE)
    B_pad = _round_up(B, TB)
    num_tiles = B_pad // TB

    x = jnp.pad(embeddings, ((0, B_pad - B), (0, 0)))           # (B_pad, D) bf16
    w1 = jnp.pad(params["w1"].astype(matmul_dtype), ((0, 0), (0, Hp - H)))
    b1 = jnp.pad(params["b1"].astype(jnp.float32), ((0, 0), (0, Hp - H)))
    w2_row = jnp.pad(params["w2"].reshape(1, H).astype(jnp.float32),
                     ((0, 0), (0, Hp - H)))

    # Runtime scalars (fc2 bias + rating range) live in SMEM; changing
    # rating_range does not recompile the kernel (must be Python floats).
    scal = jnp.concatenate([
        params["b2"].reshape(1).astype(jnp.float32),
        jnp.array([float(rating_range[0]),
                   float(rating_range[1]) - float(rating_range[0]),
                   0.0], jnp.float32),
    ])                                                          # (4,)

    isz = jnp.dtype(matmul_dtype).itemsize
    cost = pl.CostEstimate(
        flops=2 * B_pad * D * Hp + 2 * B_pad * Hp,
        transcendentals=B_pad,
        bytes_accessed=(B_pad * D * isz          # streamed activations in
                        + D * Hp * isz           # w1 (resident, read once)
                        + 2 * Hp * 4 + 4 * 4     # b1, w2 row, scalars
                        + B_pad * 4),            # predictions out
    )

    out = pl.pallas_call(
        _mlp_kernel,
        out_shape=jax.ShapeDtypeStruct((1, B_pad), jnp.float32),
        grid_spec=pltpu.PrefetchScalarGridSpec(
            num_scalar_prefetch=0,
            grid=(num_tiles,),
            in_specs=[
                pl.BlockSpec(memory_space=pltpu.MemorySpace.SMEM),  # scalars
                pl.BlockSpec((TB, D), lambda i: (i, 0)),            # activations (streamed)
                pl.BlockSpec((D, Hp), lambda i: (0, 0)),            # w1 (resident)
                pl.BlockSpec((1, Hp), lambda i: (0, 0)),            # b1 (resident)
                pl.BlockSpec((1, Hp), lambda i: (0, 0)),            # w2 row (resident)
            ],
            out_specs=pl.BlockSpec((1, TB), lambda i: (0, i)),      # lane-dense row
        ),
        compiler_params=pltpu.CompilerParams(
            dimension_semantics=("parallel",),   # shards batch tiles across v7x cores
        ),
        cost_estimate=cost,
    )(scal, x, w1, b1, w2_row)

    # Padded batch rows are garbage and must stay sliced off here.
    return out[0, :B].reshape(B, 1)


def init_params(key, n_users, n_items, n_sentiments,
                embdim_users, embdim_items, embdim_u_sent, embdim_i_sent,
                n_activations):
    """Deterministic synthetic parameter initialization (mirrors module shapes)."""
    ks = jax.random.split(key, 8)
    D = embdim_users + embdim_items + embdim_u_sent + embdim_i_sent
    params = {
        "user_emb":   jax.random.normal(ks[0], (n_users, embdim_users), jnp.float32),
        "item_emb":   jax.random.normal(ks[1], (n_items, embdim_items), jnp.float32),
        "u_sent_emb": jax.random.normal(ks[2], (n_sentiments, embdim_u_sent), jnp.float32),
        "i_sent_emb": jax.random.normal(ks[3], (n_sentiments, embdim_i_sent), jnp.float32),
        # fc1: (in=D, out=n_activations), fc2: (in=n_activations, out=1)
        "w1": jax.random.normal(ks[4], (D, n_activations), jnp.float32) * 0.1,
        "b1": jax.random.normal(ks[5], (1, n_activations), jnp.float32) * 0.1,
        "w2": jax.random.normal(ks[6], (n_activations, 1), jnp.float32) * 0.1,
        "b2": jax.random.normal(ks[7], (1, 1), jnp.float32) * 0.1,
    }
    return params


def reference_forward(X, params, rating_range, matmul_dtype=jnp.float32):
    """Pure-JAX reference (optionally mirroring the kernel's fc1 matmul dtype)."""
    emb_u = jnp.take(params["user_emb"], X[:, 0], axis=0)
    emb_i = jnp.take(params["item_emb"], X[:, 1], axis=0)
    emb_us = jnp.take(params["u_sent_emb"], X[:, 2], axis=0)
    emb_is = jnp.take(params["i_sent_emb"], X[:, 2], axis=0)
    e = jnp.concatenate([emb_u, emb_i, emb_us, emb_is], axis=1)
    h = jnp.dot(e.astype(matmul_dtype), params["w1"].astype(matmul_dtype),
                preferred_element_type=jnp.float32) + params["b1"]
    h = jnp.maximum(h, 0.0)
    z = h @ params["w2"] + params["b2"]
    return jax.nn.sigmoid(z) * (rating_range[1] - rating_range[0]) + rating_range[0]


if __name__ == "__main__":
    key = jax.random.PRNGKey(0)

    # Small, module-consistent shapes.
    n_users, n_items, n_sentiments = 40, 60, 3
    embdim_users = embdim_items = embdim_u_sent = embdim_i_sent = 8   # D = 32
    n_activations = 32
    rating_range = (1.0, 5.0)
    B = 300

    pkey, xkey = jax.random.split(key)
    params = init_params(pkey, n_users, n_items, n_sentiments,
                         embdim_users, embdim_items, embdim_u_sent, embdim_i_sent,
                         n_activations)

    xk0, xk1, xk2 = jax.random.split(xkey, 3)
    X = jnp.stack([
        jax.random.randint(xk0, (B,), 0, n_users),
        jax.random.randint(xk1, (B,), 0, n_items),
        jax.random.randint(xk2, (B,), 0, n_sentiments),
    ], axis=1).astype(jnp.int32)                    # (B, 3)

    # Multi-tile streamed path (3 batch tiles of 128 rows, padded batch).
    preds = hybrid_filtering_forward(X, params, rating_range, block_b=128)
    preds = jax.block_until_ready(preds)
    assert preds.shape == (B, 1)

    # Default (large-tile) path; heuristic keeps >= 2 grid steps for v7x.
    preds_big = jax.block_until_ready(
        hybrid_filtering_forward(X, params, rating_range))
    assert preds_big.shape == (B, 1)
    assert jnp.allclose(preds, preds_big, atol=1e-5, rtol=1e-5), "tiling mismatch"

    # Check against a reference that mirrors the kernel's bf16 fc1 inputs.
    ref_bf16 = reference_forward(X, params, rating_range, matmul_dtype=jnp.bfloat16)
    assert jnp.allclose(preds, ref_bf16, atol=1e-2, rtol=1e-2), "bf16-ref mismatch"
    # Looser sanity check against the full-f32 reference.
    ref_f32 = reference_forward(X, params, rating_range, matmul_dtype=jnp.float32)
    assert jnp.allclose(preds, ref_f32, atol=5e-2, rtol=5e-2), "f32-ref mismatch"

    print("KERNEL_OK")
</pallas_src>

<mosaic_0001>
module attributes {stable_mosaic.version = 11 : i64} {
  func.func @_mlp_kernel(%arg0: i32, %arg1: memref<4xf32, #tpu.memory_space<smem>>, %arg2: memref<128x32xbf16, #tpu.memory_space<vmem>>, %arg3: memref<32x128xbf16, #tpu.memory_space<vmem>>, %arg4: memref<1x128xf32, #tpu.memory_space<vmem>>, %arg5: memref<1x128xf32, #tpu.memory_space<vmem>>, %arg6: memref<1x128xf32, #tpu.memory_space<vmem>>) attributes {dimension_semantics = [#tpu.dimension_semantics<parallel>], iteration_bounds = array<i64: 3>, scalar_prefetch = 0 : i64, scratch_operands = 0 : i64, tpu.core_type = #tpu.core_type<tc>, window_params = [{transform_indices = @transform_0, window_bounds = array<i64: 4>}, {transform_indices = @transform_1, window_bounds = array<i64: 128, 32>}, {pipeline_mode = #tpu.pipeline_mode<synchronous>, transform_indices = @transform_2, window_bounds = array<i64: 32, 128>}, {pipeline_mode = #tpu.pipeline_mode<synchronous>, transform_indices = @transform_3, window_bounds = array<i64: 1, 128>}, {pipeline_mode = #tpu.pipeline_mode<synchronous>, transform_indices = @transform_4, window_bounds = array<i64: 1, 128>}, {transform_indices = @transform_5, window_bounds = array<i64: 1, 128>}]} {
    %c0 = arith.constant 0 : index
    %c0_0 = arith.constant 0 : index
    %0 = vector.load %arg2[%c0, %c0_0] : memref<128x32xbf16, #tpu.memory_space<vmem>>, vector<128x32xbf16>
    %c0_1 = arith.constant 0 : index
    %c0_2 = arith.constant 0 : index
    %1 = vector.load %arg3[%c0_1, %c0_2] : memref<32x128xbf16, #tpu.memory_space<vmem>>, vector<32x128xbf16>
    %cst = arith.constant dense<0.000000e+00> : vector<128x128xf32>
    %2 = tpu.matmul %0, %1, %cst {dimension_numbers = #tpu.dot_dimension_numbers<[1], [0], [0], [1], [0, 0, 1, 1], [], []>} : vector<128x32xbf16>, vector<32x128xbf16>, vector<128x128xf32> -> vector<128x128xf32>
    %c0_3 = arith.constant 0 : index
    %c0_4 = arith.constant 0 : index
    %3 = vector.load %arg4[%c0_3, %c0_4] : memref<1x128xf32, #tpu.memory_space<vmem>>, vector<1x128xf32>
    %4 = vector.broadcast %3 : vector<1x128xf32> to vector<128x128xf32>
    %5 = arith.addf %2, %4 : vector<128x128xf32>
    %cst_5 = arith.constant 0.000000e+00 : f32
    %6 = vector.broadcast %cst_5 : f32 to vector<128x128xf32>
    %7 = arith.maximumf %5, %6 : vector<128x128xf32>
    %c0_6 = arith.constant 0 : index
    %c0_7 = arith.constant 0 : index
    %8 = vector.load %arg5[%c0_6, %c0_7] : memref<1x128xf32, #tpu.memory_space<vmem>>, vector<1x128xf32>
    %cst_8 = arith.constant dense<0.000000e+00> : vector<1x128xf32>
    %9 = tpu.matmul %8, %7, %cst_8 {dimension_numbers = #tpu.dot_dimension_numbers<[1], [1], [0], [0], [0, 0, 1, 0], [], []>} : vector<1x128xf32>, vector<128x128xf32>, vector<1x128xf32> -> vector<1x128xf32>
    %c0_9 = arith.constant 0 : index
    %10 = memref.load %arg1[%c0_9] : memref<4xf32, #tpu.memory_space<smem>>
    %c1 = arith.constant 1 : index
    %11 = memref.load %arg1[%c1] : memref<4xf32, #tpu.memory_space<smem>>
    %c2 = arith.constant 2 : index
    %12 = memref.load %arg1[%c2] : memref<4xf32, #tpu.memory_space<smem>>
    %13 = vector.broadcast %10 : f32 to vector<1x128xf32>
    %14 = arith.addf %9, %13 : vector<1x128xf32>
    %15 = arith.negf %14 : vector<1x128xf32>
    %16 = math.exp %15 : vector<1x128xf32>
    %cst_10 = arith.constant 1.000000e+00 : f32
    %17 = vector.broadcast %cst_10 : f32 to vector<1x128xf32>
    %18 = arith.addf %17, %16 : vector<1x128xf32>
    %19 = arith.divf %17, %18 : vector<1x128xf32>
    %20 = vector.broadcast %12 : f32 to vector<1x128xf32>
    %21 = arith.mulf %19, %20 : vector<1x128xf32>
    %22 = vector.broadcast %11 : f32 to vector<1x128xf32>
    %23 = arith.addf %21, %22 : vector<1x128xf32>
    %c0_11 = arith.constant 0 : index
    %c0_12 = arith.constant 0 : index
    %24 = vector.load %arg6[%c0_11, %c0_12] : memref<1x128xf32, #tpu.memory_space<vmem>>, vector<1x128xf32>
    tpu.vector_store %arg6[%c0_11, %c0_12], %23 {strides = array<i32>} : memref<1x128xf32, #tpu.memory_space<vmem>>, vector<1x128xf32>,
    return
  }
  func.func @transform_0(%arg0: i32) -> i32 {
    %c0_i32 = arith.constant 0 : i32
    %c0_i32_0 = arith.constant 0 : i32
    return %c0_i32 : i32
  }
  func.func @transform_1(%arg0: i32) -> (i32, i32) {
    %c0_i32 = arith.constant 0 : i32
    %c0_i32_0 = arith.constant 0 : i32
    return %arg0, %c0_i32 : i32, i32
  }
  func.func @transform_2(%arg0: i32) -> (i32, i32) {
    %c0_i32 = arith.constant 0 : i32
    %c0_i32_0 = arith.constant 0 : i32
    %c0_i32_1 = arith.constant 0 : i32
    return %c0_i32, %c0_i32_0 : i32, i32
  }
  func.func @transform_3(%arg0: i32) -> (i32, i32) {
    %c0_i32 = arith.constant 0 : i32
    %c0_i32_0 = arith.constant 0 : i32
    %c0_i32_1 = arith.constant 0 : i32
    return %c0_i32, %c0_i32_0 : i32, i32
  }
  func.func @transform_4(%arg0: i32) -> (i32, i32) {
    %c0_i32 = arith.constant 0 : i32
    %c0_i32_0 = arith.constant 0 : i32
    %c0_i32_1 = arith.constant 0 : i32
    return %c0_i32, %c0_i32_0 : i32, i32
  }
  func.func @transform_5(%arg0: i32) -> (i32, i32) {
    %c0_i32 = arith.constant 0 : i32
    %c0_i32_0 = arith.constant 0 : i32
    return %c0_i32, %arg0 : i32, i32
  }
}

</mosaic_0001>

<llo_original>
// kernel: tpu_custom_call.1
$region0: #{tpu_custom_call.1}
  #allocation0 [shape = 'u32[]', space=smem, size = 0x4, offset = 0x4, fixed_abs, tag = 'smem constant byte address 0x4 - core index']
  #allocation1 [shape = 'u32[144,128]{1,0:T(1,128)}', space=vmem, size = 0x12000, scoped, tag = 'internal scratch']
  %s0 = inlined_call_operand.vmem [shape: f32[4], index: 0, kind: input, shape index: {}]
  %s1 = inlined_call_operand.vmem [shape: bf16[384,32], index: 1, kind: input, shape index: {}]
  %s2 = inlined_call_operand.vmem [shape: bf16[32,128], index: 2, kind: input, shape index: {}]
  %s3 = inlined_call_operand.vmem [shape: f32[1,128], index: 3, kind: input, shape index: {}]
  %s4 = inlined_call_operand.vmem [shape: f32[1,128], index: 4, kind: input, shape index: {}]
  %s5 = inlined_call_operand.hbm [shape: f32[1,384], index: 5, kind: output, shape index: {}]
  %s6 = sld [smem:[#allocation0]]
  $region57: #{tpu_custom_call.1} parent=0
    _
  %s8 = ssub.s32 1, %s6
  %s9 = scalar_select 0, %s8, %s6
  $region1: #{tpu_custom_call.1} parent=0
    #allocation2 [shape = 'u8[512]{0}', space=smem, size = 0x200, scoped, tag = 'input window, operand 0, single buffered']
    #allocation3 [shape = 's32[2]{0}', space=sflag, size = 0x8, scoped, tag = 'scoped memory for tpu_custom_call.1']
    #allocation4 [shape = 's32[2]{0}', space=sflag, size = 0x8, scoped, tag = 'scoped memory for tpu_custom_call.1']
    #allocation5 [shape = 'u8[1024]{0}', space=vmem, size = 0x400, scoped, tag = 'output window, operand 0']
    %10 = vsyncpa [#allocation4], 0
    %11 = vsyncpa [#allocation3], 0
    %s12 = scalar_lea.sflag [#allocation3], 1
    %13 = vsyncpa %s12, 0
    loop: start=0, step=1, limit=5
    $region2: #{tpu_custom_call.1} parent=1 // loop_pre_header
      _
    $region3: #{tpu_custom_call.1} parent=1 // loop_header
      %s15 = sphi 0, %s19
      %p16 = scmp.ge.s32.totalorder %s15, 5
      %s23 = sphi 0, %s23
      %s25 = sphi 0, %s23
      %s26 = sphi 0, %s25
      %s40 = sphi 0, %s26
      %s46 = sphi 0, %s48
      %s49 = sphi 0, %s46
      %s50 = sphi 0, %s49
      %s66 = sphi 0, %s50
      %s70 = sphi 0, %s70
      %s72 = sphi 0, %s70
      %s73 = sphi 0, %s72
      %s87 = sphi 0, %s73
      %s91 = sphi 0, %s91
      %s93 = sphi 0, %s91
      %s94 = sphi 0, %s93
      %s108 = sphi 0, %s94
      %s112 = sphi 0, %s112
      %s114 = sphi 0, %s112
      %s115 = sphi 0, %s114
      %s129 = sphi 0, %s115
      %s135 = sphi 0, %s137
      %s138 = sphi 0, %s135
      %s139 = sphi 0, %s138
      %s155 = sphi 0, %s139
    $region4: #{tpu_custom_call.1} parent=1 // loop_header_branch
      %18 = sbr.rel (%p16) target = $region8
    $region5: #{tpu_custom_call.1} parent=1 // loop_body
      %s20 = ssub.s32 %s15, 1
      %s21 = ssub.s32 %s15, 2
      %s22 = sadd.s32 %s15, 1
      %s24 = sadd.s32 %s23, 1
      %p27 = scmp.eq.s32.totalorder %s15, 2
      %p28 = scmp.ne.s32.totalorder %s23, %s25
      %p29 = scmp.eq.s32.totalorder %s15, 0
      %p30 = por %p28, %p29
      %p31 = scmp.ne.s32.totalorder %s23, %s25
      %p32 = scmp.eq.s32.totalorder %s20, 2
      %p33 = por %p31, %p32
      %p34 = scmp.ne.s32.totalorder %s25, %s26
      %p35 = scmp.eq.s32.totalorder %s20, 0
      %p36 = por %p34, %p35
      %p37 = scmp.ne.s32.totalorder %s25, %s26
      %p38 = scmp.eq.s32.totalorder %s21, 2
      %p39 = por %p37, %p38
      %p41 = scmp.ne.s32.totalorder %s26, %s40
      %p42 = scmp.eq.s32.totalorder %s21, 0
      %p43 = por %p41, %p42
      %s44 = ssub.s32 %s15, %s22
      %p45 = scmp.eq.s32.totalorder %s44, 0
      %s47 = sadd.s32 %s46, 1
      %s48 = scalar_select %p45, %s46, %s47
      %p51 = pneg %p45
      %p52 = scmp.eq.s32.totalorder %s15, 2
      %p53 = por %p51, %p52
      %p54 = scmp.ne.s32.totalorder %s46, %s49
      %p55 = scmp.eq.s32.totalorder %s15, 0
      %p56 = por %p54, %p55
      %p57 = scmp.ne.s32.totalorder %s46, %s49
      %p58 = scmp.eq.s32.totalorder %s20, 2
      %p59 = por %p57, %p58
      %p60 = scmp.ne.s32.totalorder %s49, %s50
      %p61 = scmp.eq.s32.totalorder %s20, 0
      %p62 = por %p60, %p61
      %p63 = scmp.ne.s32.totalorder %s49, %s50
      %p64 = scmp.eq.s32.totalorder %s21, 2
      %p65 = por %p63, %p64
      %p67 = scmp.ne.s32.totalorder %s50, %s66
      %p68 = scmp.eq.s32.totalorder %s21, 0
      %p69 = por %p67, %p68
      %s71 = sadd.s32 %s70, 1
      %p74 = scmp.eq.s32.totalorder %s15, 2
      %p75 = scmp.ne.s32.totalorder %s70, %s72
      %p76 = scmp.eq.s32.totalorder %s15, 0
      %p77 = por %p75, %p76
      %p78 = scmp.ne.s32.totalorder %s70, %s72
      %p79 = scmp.eq.s32.totalorder %s20, 2
      %p80 = por %p78, %p79
      %p81 = scmp.ne.s32.totalorder %s72, %s73
      %p82 = scmp.eq.s32.totalorder %s20, 0
      %p83 = por %p81, %p82
      %p84 = scmp.ne.s32.totalorder %s72, %s73
      %p85 = scmp.eq.s32.totalorder %s21, 2
      %p86 = por %p84, %p85
      %p88 = scmp.ne.s32.totalorder %s73, %s87
      %p89 = scmp.eq.s32.totalorder %s21, 0
      %p90 = por %p88, %p89
      %s92 = sadd.s32 %s91, 1
      %p95 = scmp.eq.s32.totalorder %s15, 2
      %p96 = scmp.ne.s32.totalorder %s91, %s93
      %p97 = scmp.eq.s32.totalorder %s15, 0
      %p98 = por %p96, %p97
      %p99 = scmp.ne.s32.totalorder %s91, %s93
      %p100 = scmp.eq.s32.totalorder %s20, 2
      %p101 = por %p99, %p100
      %p102 = scmp.ne.s32.totalorder %s93, %s94
      %p103 = scmp.eq.s32.totalorder %s20, 0
      %p104 = por %p102, %p103
      %p105 = scmp.ne.s32.totalorder %s93, %s94
      %p106 = scmp.eq.s32.totalorder %s21, 2
      %p107 = por %p105, %p106
      %p109 = scmp.ne.s32.totalorder %s94, %s108
      %p110 = scmp.eq.s32.totalorder %s21, 0
      %p111 = por %p109, %p110
      %s113 = sadd.s32 %s112, 1
      %p116 = scmp.eq.s32.totalorder %s15, 2
      %p117 = scmp.ne.s32.totalorder %s112, %s114
      %p118 = scmp.eq.s32.totalorder %s15, 0
      %p119 = por %p117, %p118
      %p120 = scmp.ne.s32.totalorder %s112, %s114
      %p121 = scmp.eq.s32.totalorder %s20, 2
      %p122 = por %p120, %p121
      %p123 = scmp.ne.s32.totalorder %s114, %s115
      %p124 = scmp.eq.s32.totalorder %s20, 0
      %p125 = por %p123, %p124
      %p126 = scmp.ne.s32.totalorder %s114, %s115
      %p127 = scmp.eq.s32.totalorder %s21, 2
      %p128 = por %p126, %p127
      %p130 = scmp.ne.s32.totalorder %s115, %s129
      %p131 = scmp.eq.s32.totalorder %s21, 0
      %p132 = por %p130, %p131
      %s133 = ssub.s32 %s15, %s22
      %p134 = scmp.eq.s32.totalorder %s133, 0
      %s136 = sadd.s32 %s135, 1
      %s137 = scalar_select %p134, %s135, %s136
      %p140 = pneg %p134
      %p141 = scmp.eq.s32.totalorder %s15, 2
      %p142 = por %p140, %p141
      %p143 = scmp.ne.s32.totalorder %s135, %s138
      %p144 = scmp.eq.s32.totalorder %s15, 0
      %p145 = por %p143, %p144
      %p146 = scmp.ne.s32.totalorder %s135, %s138
      %p147 = scmp.eq.s32.totalorder %s20, 2
      %p148 = por %p146, %p147
      %p149 = scmp.ne.s32.totalorder %s138, %s139
      %p150 = scmp.eq.s32.totalorder %s20, 0
      %p151 = por %p149, %p150
      %p152 = scmp.ne.s32.totalorder %s138, %s139
      %p153 = scmp.eq.s32.totalorder %s21, 2
      %p154 = por %p152, %p153
      %p156 = scmp.ne.s32.totalorder %s139, %s155
      %p157 = scmp.eq.s32.totalorder %s21, 0
      %p158 = por %p156, %p157
      %p159 = scmp.le.s32.totalorder 1, %s15
      %p160 = scmp.lt.s32.totalorder %s15, 4
      %p161 = pnand %p159, %p160
      %p162 = pneg %p161
      // Predicated region
      $region9: #{tpu_custom_call.1} parent=5 // pred_check
        _
      $region10: #{tpu_custom_call.1} parent=5 // pred_check_branch
        %164 = sbr.rel (%p161) target = $region12
      $region11: #{tpu_custom_call.1} parent=5 // pred_region
        %s165 = ssub.s32 %s15, 1
        // Predicated region
        $region13: #{tpu_custom_call.1} parent=11 // pred_check
          %p166 = pneg %p36
        $region14: #{tpu_custom_call.1} parent=11 // pred_check_branch
          %168 = sbr.rel (%p166) target = $region16
        $region15: #{tpu_custom_call.1} parent=11 // pred_region
          %s170 = ssub.s32 16, 16
          %171 = vsyncadd [#allocation4], %s170
          %s173 = sshll.u32 %s0, 4
          %s174 = int_to_ptr.vmem [resolvable:$true] %s173
          %176 = dma.vmem_to_smem %s174, 16, [#allocation2], [#allocation4]
        $region16: #{tpu_custom_call.1} parent=11 // pred_fallthru
          _
        // Predicated region
        $region17: #{tpu_custom_call.1} parent=11 // pred_check
          %p177 = pneg %p83
        $region18: #{tpu_custom_call.1} parent=11 // pred_check_branch
          %179 = sbr.rel (%p177) target = $region20
        $region19: #{tpu_custom_call.1} parent=11 // pred_region
          _
        $region20: #{tpu_custom_call.1} parent=11 // pred_fallthru
          _
        // Predicated region
        $region21: #{tpu_custom_call.1} parent=11 // pred_check
          %p180 = pneg %p104
        $region22: #{tpu_custom_call.1} parent=11 // pred_check_branch
          %182 = sbr.rel (%p180) target = $region24
        $region23: #{tpu_custom_call.1} parent=11 // pred_region
          _
        $region24: #{tpu_custom_call.1} parent=11 // pred_fallthru
          _
        // Predicated region
        $region25: #{tpu_custom_call.1} parent=11 // pred_check
          %p183 = pneg %p125
        $region26: #{tpu_custom_call.1} parent=11 // pred_check_branch
          %185 = sbr.rel (%p183) target = $region28
        $region27: #{tpu_custom_call.1} parent=11 // pred_region
          _
        $region28: #{tpu_custom_call.1} parent=11 // pred_fallthru
          _
      $region12: #{tpu_custom_call.1} parent=5 // pred_fallthru
        _
      %p186 = scmp.lt.s32.totalorder %s15, 3
      // Predicated region
      $region29: #{tpu_custom_call.1} parent=5 // pred_check
        %p187 = pneg %p186
      $region30: #{tpu_custom_call.1} parent=5 // pred_check_branch
        %189 = sbr.rel (%p187) target = $region32
      $region31: #{tpu_custom_call.1} parent=5 // pred_region
        // Predicated region
        $region33: #{tpu_custom_call.1} parent=31 // pred_check
          %p190 = pneg %p56
        $region34: #{tpu_custom_call.1} parent=31 // pred_check_branch
          %192 = sbr.rel (%p190) target = $region36
        $region35: #{tpu_custom_call.1} parent=31 // pred_region
          %s193 = smul.u32 16, %s15
          %p194 = scmp.lt.s32.totalorder %s193, 47
          %s195 = scalar_select %p194, %s193, 47
          %s196 = smul.addr %s195, 4
          %s197 = scalar_lea.vmem %s1, %s196
          %s198 = smul.u32 16, %s15
        $region36: #{tpu_custom_call.1} parent=31 // pred_fallthru
          _
      $region32: #{tpu_custom_call.1} parent=5 // pred_fallthru
        _
      %p199 = scmp.le.s32.totalorder 1, %s15
      %p200 = scmp.lt.s32.totalorder %s15, 4
      %p201 = pnand %p199, %p200
      %p202 = pneg %p201
      // Predicated region
      $region37: #{tpu_custom_call.1} parent=5 // pred_check
        _
      $region38: #{tpu_custom_call.1} parent=5 // pred_check_branch
        %204 = sbr.rel (%p201) target = $region40
      $region39: #{tpu_custom_call.1} parent=5 // pred_region
        %s205 = ssub.s32 %s15, 1
        // Predicated region
        $region41: #{tpu_custom_call.1} parent=39 // pred_check
          %p206 = pneg %p36
        $region42: #{tpu_custom_call.1} parent=39 // pred_check_branch
          %208 = sbr.rel (%p206) target = $region44
        $region43: #{tpu_custom_call.1} parent=39 // pred_region
          %209 = dma.done [#allocation4], 16
        $region44: #{tpu_custom_call.1} parent=39 // pred_fallthru
          _
        %210 = sfence
        %p211 = pneg %p36
        %p212 = pneg %p33
        %s213 = smul.u32 16, %s20
        %p214 = scmp.lt.s32.totalorder %s213, 47
        %s215 = scalar_select %p214, %s213, 47
        %s216 = smul.addr %s215, 4
        %s217 = scalar_lea.vmem %s1, %s216
        %p218 = pneg %p62
        %p219 = pneg %p59
        %p220 = pneg %p83
        %p221 = pneg %p80
        %p222 = pneg %p104
        %p223 = pneg %p101
        %p224 = pneg %p125
        %p225 = pneg %p122
        %p226 = pneg %p151
        %p227 = pneg %p148
        %s228 = sand.u32 %s138, 1
        %s229 = scalar_lea.sflag [#allocation3], %s228
        %s230 = sand.u32 %s138, 1
        %s231 = scalar_lea.vmem [#allocation5], %s230
        %s232 = smul.u32 16, %s20
        %p233 = scmp.lt.s32.totalorder %s232, 47
        %s234 = scalar_select %p233, %s232, 47
        %s235 = smul.addr %s234, 4
        %s236 = scalar_lea.vmem %s1, %s235
        %s237 = smul.u32 16, %s20
        %v239 = vld [vmem:[%s236] sm:$0xf]
        %v240 = vld [vmem:[%s236 + $0x4] sm:$0xf]
        %v241 = vld [vmem:[%s236 + $0x8] sm:$0xf]
        %v242 = vld [vmem:[%s236 + $0xc] sm:$0xf]
        %v243 = vld [vmem:[%s236 + $0x10] sm:$0xf]
        %v244 = vld [vmem:[%s236 + $0x14] sm:$0xf]
        %v245 = vld [vmem:[%s236 + $0x18] sm:$0xf]
        %v246 = vld [vmem:[%s236 + $0x1c] sm:$0xf]
        %v247 = vld [vmem:[%s236 + $0x20] sm:$0xf]
        %v248 = vld [vmem:[%s236 + $0x24] sm:$0xf]
        %v249 = vld [vmem:[%s236 + $0x28] sm:$0xf]
        %v250 = vld [vmem:[%s236 + $0x2c] sm:$0xf]
        %v251 = vld [vmem:[%s236 + $0x30] sm:$0xf]
        %v252 = vld [vmem:[%s236 + $0x34] sm:$0xf]
        %v253 = vld [vmem:[%s236 + $0x38] sm:$0xf]
        %v254 = vld [vmem:[%s236 + $0x3c] sm:$0xf]
        %v255 = vld [vmem:[%s2] sm:$0xf]
        %v256 = vld [vmem:[%s2 + $0x4] sm:$0xf]
        %v257 = vld [vmem:[%s2 + $0x8] sm:$0xf]
        %v258 = vld [vmem:[%s2 + $0xc] sm:$0xf]
        %v259 = vld [vmem:[%s3] sm:$0x1]
        %v261 = vlaneseq
        %v262 = vshrl.u32 %v261, 7
        %v263 = vsub.s32 0, %v262
        %v264 = vrot.slane %v259, %v263
        %v282 = vunpack.c.l.b16 %v239
        %v283 = vunpack.c.l.b16 %v240
        %v284 = vunpack.c.l.b16 %v241
        %v285 = vunpack.c.l.b16 %v242
        %v286 = vunpack.c.l.b16 %v243
        %v287 = vunpack.c.l.b16 %v244
        %v288 = vunpack.c.l.b16 %v245
        %v289 = vunpack.c.l.b16 %v246
        %v290 = vunpack.c.l.b16 %v247
        %v291 = vunpack.c.l.b16 %v248
        %v292 = vunpack.c.l.b16 %v249
        %v293 = vunpack.c.l.b16 %v250
        %v294 = vunpack.c.l.b16 %v251
        %v295 = vunpack.c.l.b16 %v252
        %v296 = vunpack.c.l.b16 %v253
        %v297 = vunpack.c.l.b16 %v254
        %v298 = vpack.c.b16 %v283, %v282
        %v299 = vpack.c.b16 %v285, %v284
        %v300 = vpack.c.b16 %v287, %v286
        %v301 = vpack.c.b16 %v289, %v288
        %v302 = vpack.c.b16 %v291, %v290
        %v303 = vpack.c.b16 %v293, %v292
        %v304 = vpack.c.b16 %v295, %v294
        %v305 = vpack.c.b16 %v297, %v296
        %v310 = vunpack.c.l.b16 %v255
        %v311 = vunpack.c.l.b16 %v256
        %v312 = vunpack.c.l.b16 %v257
        %v313 = vunpack.c.l.b16 %v258
        %v314 = vpack.c.b16 %v311, %v310
        %v315 = vpack.c.b16 %v313, %v312
        %vm318 = vcmask 261120
        %v320 = vsel %vm318, %v298, 0
        %v323 = vsel %vm318, %v299, 0
        %v326 = vsel %vm318, %v300, 0
        %v329 = vsel %vm318, %v301, 0
        %v332 = vsel %vm318, %v302, 0
        %v335 = vsel %vm318, %v303, 0
        %v338 = vsel %vm318, %v304, 0
        %v341 = vsel %vm318, %v305, 0
        %343 = vmatprep.subr.bf16.mxu0 0
        %344 = vmatpush1.bf16.msra.mxu0 %v314
        %345 = vmatprep.subr.bf16.mxu0 0
        %346 = vmatpush1.bf16.msra.mxu0 %v315
        %347 = vmatprep.subr.bf16.mxu0 0
        %348 = vmatpush1.bf16.msra.mxu0 0
        %349 = vmatprep.subr.bf16.mxu0 0
        %350 = vmatpush1.bf16.msra.mxu0 0
        %351 = vmatprep.subr.bf16.mxu0 0
        %352 = vmatpush1.bf16.msra.mxu0 0
        %353 = vmatprep.subr.bf16.mxu0 0
        %354 = vmatpush1.bf16.msra.mxu0 0
        %355 = vmatprep.subr.bf16.mxu0 0
        %356 = vmatpush1.bf16.msra.mxu0 0
        %357 = vmatprep.subr.bf16.mxu0 0
        %358 = vmatpush1.bf16.msra.mxu0 0
        %359 = vmatprep.subr.bf16.mxu0 0
        %360 = vmatpush1.bf16.msra.mxu0 0
        %361 = vmatprep.subr.bf16.mxu0 0
        %362 = vmatpush1.bf16.msra.mxu0 0
        %363 = vmatprep.subr.bf16.mxu0 0
        %364 = vmatpush1.bf16.msra.mxu0 0
        %365 = vmatprep.subr.bf16.mxu0 0
        %366 = vmatpush1.bf16.msra.mxu0 0
        %367 = vmatprep.subr.bf16.mxu0 0
        %368 = vmatpush1.bf16.msra.mxu0 0
        %369 = vmatprep.subr.bf16.mxu0 0
        %370 = vmatpush1.bf16.msra.mxu0 0
        %371 = vmatprep.subr.bf16.mxu0 0
        %372 = vmatpush1.bf16.msra.mxu0 0
        %373 = vmatprep.subr.bf16.mxu0 0
        %374 = vmatpush1.bf16.msra.mxu0 0
        %375 = vmatprep.mubr.bf16.mxu0 0
        %376 = vmatmul.mubr.bf16.gmra.mrb[0].mxu0 %v320
        %v377 = vpop.f32.mrb[0].mxu0
        %v378 = vadd.f32 %v264, %v377
        %v379 = vpop.f32.mrb[0].mxu0
        %v380 = vpop.f32.mrb[0].mxu0
        %v381 = vadd.f32 %v264, %v380
        %v382 = vpop.f32.mrb[0].mxu0
        %383 = vmatprep.mubr.bf16.mxu0 0
        %384 = vmatmul.mubr.bf16.gmra.mrb[0].mxu0 %v323
        %v385 = vpop.f32.mrb[0].mxu0
        %v386 = vadd.f32 %v264, %v385
        %v387 = vpop.f32.mrb[0].mxu0
        %v388 = vpop.f32.mrb[0].mxu0
        %v389 = vadd.f32 %v264, %v388
        %v390 = vpop.f32.mrb[0].mxu0
        %391 = vmatprep.mubr.bf16.mxu0 0
        %392 = vmatmul.mubr.bf16.gmra.mrb[0].mxu0 %v326
        %v393 = vpop.f32.mrb[0].mxu0
        %v394 = vadd.f32 %v264, %v393
        %v395 = vpop.f32.mrb[0].mxu0
        %v396 = vpop.f32.mrb[0].mxu0
        %v397 = vadd.f32 %v264, %v396
        %v398 = vpop.f32.mrb[0].mxu0
        %399 = vmatprep.mubr.bf16.mxu0 0
        %400 = vmatmul.mubr.bf16.gmra.mrb[0].mxu0 %v329
        %v401 = vpop.f32.mrb[0].mxu0
        %v402 = vadd.f32 %v264, %v401
        %v403 = vpop.f32.mrb[0].mxu0
        %v404 = vpop.f32.mrb[0].mxu0
        %v405 = vadd.f32 %v264, %v404
        %v406 = vpop.f32.mrb[0].mxu0
        %407 = vmatprep.mubr.bf16.mxu0 0
        %408 = vmatmul.mubr.bf16.gmra.mrb[0].mxu0 %v332
        %v409 = vpop.f32.mrb[0].mxu0
        %v410 = vadd.f32 %v264, %v409
        %v411 = vpop.f32.mrb[0].mxu0
        %v412 = vpop.f32.mrb[0].mxu0
        %v413 = vadd.f32 %v264, %v412
        %v414 = vpop.f32.mrb[0].mxu0
        %415 = vmatprep.mubr.bf16.mxu0 0
        %416 = vmatmul.mubr.bf16.gmra.mrb[0].mxu0 %v335
        %v417 = vpop.f32.mrb[0].mxu0
        %v418 = vadd.f32 %v264, %v417
        %v419 = vpop.f32.mrb[0].mxu0
        %v420 = vpop.f32.mrb[0].mxu0
        %v421 = vadd.f32 %v264, %v420
        %v422 = vpop.f32.mrb[0].mxu0
        %423 = vmatprep.mubr.bf16.mxu0 0
        %424 = vmatmul.mubr.bf16.gmra.mrb[0].mxu0 %v338
        %v425 = vpop.f32.mrb[0].mxu0
        %v426 = vadd.f32 %v264, %v425
        %v427 = vpop.f32.mrb[0].mxu0
        %v428 = vpop.f32.mrb[0].mxu0
        %v429 = vadd.f32 %v264, %v428
        %v430 = vpop.f32.mrb[0].mxu0
        %431 = vmatprep.mubr.bf16.mxu0 0
        %432 = vmatmul.mubr.bf16.gmra.mrb[0].mxu0 %v341
        %v433 = vpop.f32.mrb[0].mxu0
        %v434 = vadd.f32 %v264, %v433
        %v435 = vpop.f32.mrb[0].mxu0
        %v436 = vpop.f32.mrb[0].mxu0
        %v437 = vadd.f32 %v264, %v436
        %v438 = vpop.f32.mrb[0].mxu0
        %439 = vdwg.mxu0
        %v440 = vmax.f32 %v378, 0.0
        %v441 = vmax.f32 %v381, 0.0
        %v442 = vmax.f32 %v386, 0.0
        %v443 = vmax.f32 %v389, 0.0
        %v444 = vmax.f32 %v394, 0.0
        %v445 = vmax.f32 %v397, 0.0
        %v446 = vmax.f32 %v402, 0.0
        %v447 = vmax.f32 %v405, 0.0
        %v448 = vmax.f32 %v410, 0.0
        %v449 = vmax.f32 %v413, 0.0
        %v450 = vmax.f32 %v418, 0.0
        %v451 = vmax.f32 %v421, 0.0
        %v452 = vmax.f32 %v426, 0.0
        %v453 = vmax.f32 %v429, 0.0
        %v454 = vmax.f32 %v434, 0.0
        %v455 = vmax.f32 %v437, 0.0
        %v456 = vld [vmem:[%s4] sm:$0x1]
        %s457 = sld [smem:[#allocation2]]
        %s458 = sld [smem:[#allocation2 + $0x1]]
        %s459 = sld [smem:[#allocation2 + $0x2]]
        %v460 = vstv %s457
        %461 = vmatprep.subr.mxu0 0.0
        %462 = vmatpush1.xpose.msra.mxu0 %v440
        %463 = vmatprep.subr.mxu0 0.0
        %464 = vmatpush1.xpose.msra.mxu0 %v441
        %465 = vmatprep.subr.mxu0 0.0
        %466 = vmatpush1.xpose.msra.mxu0 %v442
        %467 = vmatprep.subr.mxu0 0.0
        %468 = vmatpush1.xpose.msra.mxu0 %v443
        %469 = vmatprep.subr.mxu0 0.0
        %470 = vmatpush1.xpose.msra.mxu0 %v444
        %471 = vmatprep.subr.mxu0 0.0
        %472 = vmatpush1.xpose.msra.mxu0 %v445
        %473 = vmatprep.subr.mxu0 0.0
        %474 = vmatpush1.xpose.msra.mxu0 %v446
        %475 = vmatprep.subr.mxu0 0.0
        %476 = vmatpush1.xpose.msra.mxu0 %v447
        %477 = vmatprep.subr.mxu0 0.0
        %478 = vmatpush1.xpose.msra.mxu0 %v448
        %479 = vmatprep.subr.mxu0 0.0
        %480 = vmatpush1.xpose.msra.mxu0 %v449
        %481 = vmatprep.subr.mxu0 0.0
        %482 = vmatpush1.xpose.msra.mxu0 %v450
        %483 = vmatprep.subr.mxu0 0.0
        %484 = vmatpush1.xpose.msra.mxu0 %v451
        %485 = vmatprep.subr.mxu0 0.0
        %486 = vmatpush1.xpose.msra.mxu0 %v452
        %487 = vmatprep.subr.mxu0 0.0
        %488 = vmatpush1.xpose.msra.mxu0 %v453
        %489 = vmatprep.subr.mxu0 0.0
        %490 = vmatpush1.xpose.msra.mxu0 %v454
        %491 = vmatprep.subr.mxu0 0.0
        %492 = vmatpush1.xpose.msra.mxu0 %v455
        %493 = vmatprep.subr.mxu0 0.0
        %494 = vmatpush1.xpose.msra.mxu0 0.0
        %495 = vmatprep.subr.mxu0 0.0
        %496 = vmatpush1.xpose.msra.mxu0 0.0
        %497 = vmatprep.subr.mxu0 0.0
        %498 = vmatpush1.xpose.msra.mxu0 0.0
        %499 = vmatprep.subr.mxu0 0.0
        %500 = vmatpush1.xpose.msra.mxu0 0.0
        %501 = vmatprep.subr.mxu0 0.0
        %502 = vmatpush1.xpose.msra.mxu0 0.0
        %503 = vmatprep.subr.mxu0 0.0
        %504 = vmatpush1.xpose.msra.mxu0 0.0
        %505 = vmatprep.subr.mxu0 0.0
        %506 = vmatpush1.xpose.msra.mxu0 0.0
        %507 = vmatprep.subr.mxu0 0.0
        %508 = vmatpush1.xpose.msra.mxu0 0.0
        %509 = vmatprep.subr.mxu0 0.0
        %510 = vmatpush1.xpose.msra.mxu0 0.0
        %511 = vmatprep.subr.mxu0 0.0
        %512 = vmatpush1.xpose.msra.mxu0 0.0
        %513 = vmatprep.subr.mxu0 0.0
        %514 = vmatpush1.xpose.msra.mxu0 0.0
        %515 = vmatprep.subr.mxu0 0.0
        %516 = vmatpush1.xpose.msra.mxu0 0.0
        %517 = vmatprep.subr.mxu0 0.0
        %518 = vmatpush1.xpose.msra.mxu0 0.0
        %519 = vmatprep.subr.mxu0 0.0
        %520 = vmatpush1.xpose.msra.mxu0 0.0
        %521 = vmatprep.subr.mxu0 0.0
        %522 = vmatpush1.xpose.msra.mxu0 0.0
        %523 = vmatprep.subr.mxu0 0.0
        %524 = vmatpush1.xpose.msra.mxu0 0.0
        %525 = vmatprep.mubr.f32.mxu0 0.0
        %526 = vmatmul.mubr.f32.gmra.mrb[0].mxu0 %v456
        %v527 = vpop.f32.mrb[0].mxu0
        %v528 = vadd.f32 %v460, %v527
        %v529 = vpop.f32.mrb[0].mxu0
        %530 = vdwg.mxu0
        %v531 = vxor.u32 %v528, 2147483648
        %v532 = vmul.f32 %v531, 1.442695
        %v533 = vpow.pop %v532
        %v534 = vadd.f32 %v533, 1.0
        %v535 = vrcp.pop %v534
        %v536 = vmul.f32 1.0, %v535
        %v537 = vstv %s459
        %v538 = vmul.f32 %v536, %v537
        %v539 = vstv %s458
        %v540 = vadd.f32 %v538, %v539
        %541 = vst [vmem:[%s231] sm:$0x1] %v540
        %s542 = sand.u32 %s138, 1
        %s543 = scalar_lea.sflag [#allocation3], %s542
        %s544 = sand.u32 %s138, 1
        %s545 = scalar_lea.vmem [#allocation5], %s544
        // Predicated region
        $region45: #{tpu_custom_call.1} parent=39 // pred_check
          %p546 = pneg %p148
        $region46: #{tpu_custom_call.1} parent=39 // pred_check_branch
          %548 = sbr.rel (%p546) target = $region48
        $region47: #{tpu_custom_call.1} parent=39 // pred_region
          %s550 = ssub.s32 16, 16
          %551 = vsyncadd %s543, %s550
          %s552 = smul.addr %s20, 16
          %s553 = scalar_lea.hbm %s5, %s552
          %s555 = sshll.u32 %s545, 4
          %s556 = int_to_ptr.vmem [resolvable:$true] %s555
          %558 = dma.vmem_to_hbm [thread:$0]  %s556, 16, %s553, %s543
        $region48: #{tpu_custom_call.1} parent=39 // pred_fallthru
          _
      $region40: #{tpu_custom_call.1} parent=5 // pred_fallthru
        _
      %p559 = scmp.le.s32.totalorder 2, %s15
      // Predicated region
      $region49: #{tpu_custom_call.1} parent=5 // pred_check
        %p560 = pneg %p559
      $region50: #{tpu_custom_call.1} parent=5 // pred_check_branch
        %562 = sbr.rel (%p560) target = $region52
      $region51: #{tpu_custom_call.1} parent=5 // pred_region
        %s563 = ssub.s32 %s15, 2
        // Predicated region
        $region53: #{tpu_custom_call.1} parent=51 // pred_check
          %p564 = pneg %p154
        $region54: #{tpu_custom_call.1} parent=51 // pred_check_branch
          %566 = sbr.rel (%p564) target = $region56
        $region55: #{tpu_custom_call.1} parent=51 // pred_region
          %s567 = sand.u32 %s139, 1
          %s568 = scalar_lea.sflag [#allocation3], %s567
          %s569 = sand.u32 %s139, 1
          %s570 = scalar_lea.vmem [#allocation5], %s569
          %571 = dma.done %s568, 16
        $region56: #{tpu_custom_call.1} parent=51 // pred_fallthru
          _
      $region52: #{tpu_custom_call.1} parent=5 // pred_fallthru
        _
    $region6: #{tpu_custom_call.1} parent=1 // loop_footer
      %s19 = sadd.s32 1, %s15
    $region7: #{tpu_custom_call.1} parent=1 // loop_footer_branch
      %14 = sbr.rel target = $region3
    $region8: #{tpu_custom_call.1} parent=1 // loop_exit
      _
    %572 = vsyncpa [#allocation3], 1
    %s573 = scalar_lea.sflag [#allocation3], 1
    %574 = vsyncpa %s573, 1
    %575 = vsyncpa [#allocation4], 1
    %s576 = scalar_lea.sflag [#allocation4], 1
    %577 = vsyncpa %s576, 1

</llo_original>
